<compile_context>
chip_gen: v6e
topology: v6e:2x2x1
jax: 0.10.0
libtpu: 0.0.40
codegen_flags: <defaults>
</compile_context>

<pallas_src>
import jax
import jax.numpy as jnp
import numpy as np
from jax import lax
from jax.experimental import pallas as pl
from jax.experimental.pallas import tpu as pltpu


def _cnn_classifier_kernel(x_ref, w1_ref, b1_ref, w2_ref, b2_ref,
                           w3_ref, b3_ref, wfc_ref, bfc_ref, out_ref):
    TB, L, Cin = x_ref.shape
    H = w1_ref.shape[1]
    K = w2_ref.shape[0] // H
    L2 = (L + 2) + 2 - K + 1      # conv2 output length
    L3 = L2 + 2 - K + 1           # conv3 output length

    cdt = w1_ref.dtype            # MXU operand dtype (f32, or bf16 on v6e/v7x)

    b1 = b1_ref[...]              # (1, H)   f32
    b2 = b2_ref[...]              # (1, H)   f32
    b3 = b3_ref[...]              # (1, H)   f32
    bfc = bfc_ref[...]            # (1, 128) f32

    # ---- conv1 (k=1, pad=1): one batched MXU matmul -------------------------
    x = x_ref[...].reshape(TB * L, Cin).astype(cdt)
    a1 = jnp.dot(x, w1_ref[...], preferred_element_type=jnp.float32)
    a1 = jnp.maximum(a1 + b1, 0.0).reshape(TB, L, H)

    # Padded conv1 activation as a register value (no VMEM scratch):
    #   [zero | relu(b1) | a1 rows | relu(b1) | zero]  -> (TB, L+4, H)
    # The relu(b1) rows are conv1's outputs on its own zero padding; the outer
    # zero rows are conv2's padding.
    edge1 = jnp.broadcast_to(jnp.maximum(b1, 0.0)[None], (TB, 1, H))
    zrow = jnp.zeros((TB, 1, H), jnp.float32)
    p1 = jnp.concatenate([zrow, edge1, a1, edge1, zrow], axis=1)

    # ---- conv2 (k=K, pad=1): im2col -> single matmul -------------------------
    x2 = jnp.concatenate([p1[:, k:k + L2, :] for k in range(K)], axis=-1)
    a2 = jnp.dot(x2.reshape(TB * L2, K * H).astype(cdt), w2_ref[...],
                 preferred_element_type=jnp.float32)
    a2 = jnp.maximum(a2 + b2, 0.0).reshape(TB, L2, H)

    # ---- conv3 (k=K, pad=1): im2col -> single matmul -------------------------
    p2 = jnp.concatenate([zrow, a2, zrow], axis=1)            # (TB, L2+2, H)
    x3 = jnp.concatenate([p2[:, k:k + L3, :] for k in range(K)], axis=-1)
    a3 = jnp.dot(x3.reshape(TB * L3, K * H).astype(cdt), w3_ref[...],
                 preferred_element_type=jnp.float32)
    a3 = jnp.maximum(a3 + b3, 0.0).reshape(TB, L3, H)

    # ---- length-sum + fc1: one (TB, H) @ (H, 128) matmul, lane-dense store ---
    s = jnp.sum(a3, axis=1)                                   # (TB, H)
    out = jnp.dot(s.astype(cdt), wfc_ref[...],
                  preferred_element_type=jnp.float32) + bfc   # (TB, 128)
    out_ref[...] = out


def cnn_embeddings_classifier_forward(embs, inds, params, *,
                                      compute_dtype=jnp.float32,
                                      batch_tile=128):
    """embs: (B, L, Cin) float32. inds is ignored (matches _detokenize).

    params = (w1 (Cin,H), b1 (1,H), w2 (K,H,H), b2 (1,H),
              w3 (K,H,H), b3 (1,H), wfc (H,2), bfc (1,2))  -- channels-last.
    compute_dtype: jnp.float32 (exact) or jnp.bfloat16 (faster MXU on v6e/v7x,
    f32 accumulation kept).
    """
    del inds  # _detokenize is identity
    w1, b1, w2, b2, w3, b3, wfc, bfc = params
    B, L, Cin = embs.shape
    H = w1.shape[1]
    K = w2.shape[0]
    L3 = L + 8 - 2 * K
    assert L3 >= 1, "kernel_size too large for this sequence length"

    OUT_LANES = 128   # lane-dense padded output; real logits are columns [:2]
    n_out = wfc.shape[1]

    # Pack conv weights for im2col matmuls: (K, H, H) -> (K*H, H).
    w2_cat = w2.reshape(K * H, H)
    w3_cat = w3.reshape(K * H, H)
    # Zero-pad FC weight/bias out to 128 lanes -> unmasked full-width store.
    wfc_pad = jnp.zeros((H, OUT_LANES), jnp.float32).at[:, :n_out].set(wfc)
    bfc_pad = jnp.zeros((1, OUT_LANES), jnp.float32).at[:, :n_out].set(bfc)

    # MXU operands in compute_dtype; biases / ReLU / sums stay f32 (v5e safe).
    w1c = w1.astype(compute_dtype)
    w2c = w2_cat.astype(compute_dtype)
    w3c = w3_cat.astype(compute_dtype)
    wfcc = wfc_pad.astype(compute_dtype)

    # Batch tiling: shard batch across grid steps ("parallel" -> both TCs on
    # v7x, and caps per-step VMEM at large B). Small batches run in one step.
    if B <= batch_tile:
        TB = B
    else:
        TB = max(8, (batch_tile // 8) * 8)   # keep output sublane dim aligned
    B_pad = -(-B // TB) * TB
    x = embs if B_pad == B else jnp.pad(embs, ((0, B_pad - B), (0, 0), (0, 0)))

    out = pl.pallas_call(
        _cnn_classifier_kernel,
        out_shape=jax.ShapeDtypeStruct((B_pad, OUT_LANES), jnp.float32),
        grid_spec=pltpu.PrefetchScalarGridSpec(
            num_scalar_prefetch=0,
            grid=(B_pad // TB,),
            in_specs=[
                pl.BlockSpec((TB, L, Cin), lambda i: (i, 0, 0)),
                pl.BlockSpec((Cin, H), lambda i: (0, 0)),
                pl.BlockSpec((1, H), lambda i: (0, 0)),
                pl.BlockSpec((K * H, H), lambda i: (0, 0)),
                pl.BlockSpec((1, H), lambda i: (0, 0)),
                pl.BlockSpec((K * H, H), lambda i: (0, 0)),
                pl.BlockSpec((1, H), lambda i: (0, 0)),
                pl.BlockSpec((H, OUT_LANES), lambda i: (0, 0)),
                pl.BlockSpec((1, OUT_LANES), lambda i: (0, 0)),
            ],
            out_specs=pl.BlockSpec((TB, OUT_LANES), lambda i: (i, 0)),
        ),
        compiler_params=pltpu.CompilerParams(
            dimension_semantics=("parallel",)),
    )(x, w1c, b1, w2c, b2, w3c, b3, wfcc, bfc_pad)

    return out[:B, :n_out]


def _torch_reference(x, w1_t, b1, w2_t, b2, w3_t, b3, wfc_t, bfc):
    """Pure-JAX replica of the PyTorch forward (torch weight layouts)."""
    dn = ('NCH', 'OIH', 'NCH')
    h = jnp.swapaxes(x, 1, 2)  # (B, Cin, L)
    h = jax.nn.relu(lax.conv_general_dilated(
        h, w1_t, (1,), [(1, 1)], dimension_numbers=dn) + b1[None, :, None])
    h = jax.nn.relu(lax.conv_general_dilated(
        h, w2_t, (1,), [(1, 1)], dimension_numbers=dn) + b2[None, :, None])
    h = jax.nn.relu(lax.conv_general_dilated(
        h, w3_t, (1,), [(1, 1)], dimension_numbers=dn) + b3[None, :, None])
    s = jnp.sum(h, axis=2)  # (B, H)
    return s @ wfc_t.T + bfc[None, :]


if __name__ == "__main__":
    B, L, Cin, H, K = 2, 8, 4, 32, 3

    key = jax.random.PRNGKey(0)
    ks = jax.random.split(key, 10)
    # Deterministic synthetic parameters in PyTorch layouts.
    w1_t = 0.1 * jax.random.normal(ks[0], (H, Cin, 1), jnp.float32)   # conv1.weight
    b1_t = 0.1 * jax.random.normal(ks[1], (H,), jnp.float32)
    w2_t = 0.1 * jax.random.normal(ks[2], (H, H, K), jnp.float32)     # conv2.weight
    b2_t = 0.1 * jax.random.normal(ks[3], (H,), jnp.float32)
    w3_t = 0.1 * jax.random.normal(ks[4], (H, H, K), jnp.float32)     # conv3.weight
    b3_t = 0.1 * jax.random.normal(ks[5], (H,), jnp.float32)
    wfc_t = 0.1 * jax.random.normal(ks[6], (2, H), jnp.float32)       # fc1.weight
    bfc_t = 0.1 * jax.random.normal(ks[7], (2,), jnp.float32)

    embs = jax.random.normal(ks[8], (B, L, Cin), jnp.float32)
    inds = jnp.zeros((B, L), jnp.int32)  # ignored by _detokenize

    # Repack weights into the kernel's channels-last layouts.
    params = (
        w1_t[:, :, 0].T,                   # (Cin, H)
        b1_t[None, :],                     # (1, H)
        jnp.transpose(w2_t, (2, 1, 0)),    # (K, H_in, H_out)
        b2_t[None, :],
        jnp.transpose(w3_t, (2, 1, 0)),    # (K, H_in, H_out)
        b3_t[None, :],
        wfc_t.T,                           # (H, 2)
        bfc_t[None, :],                    # (1, 2)
    )

    ref = _torch_reference(embs, w1_t, b1_t, w2_t, b2_t, w3_t, b3_t,
                           wfc_t, bfc_t)

    # f32 MXU operands: exact path, strict tolerance.
    out = cnn_embeddings_classifier_forward(embs, inds, params)
    out = jax.block_until_ready(out)
    np.testing.assert_allclose(np.asarray(out), np.asarray(ref),
                               rtol=1e-4, atol=1e-4)

    # bf16 MXU operands (v6e/v7x fast path), f32 accumulation: looser tolerance.
    out_bf16 = cnn_embeddings_classifier_forward(
        embs, inds, params, compute_dtype=jnp.bfloat16)
    out_bf16 = jax.block_until_ready(out_bf16)
    np.testing.assert_allclose(np.asarray(out_bf16), np.asarray(ref),
                               rtol=5e-2, atol=5e-2)

    print("KERNEL_OK")
</pallas_src>

<mosaic_0001>
module attributes {stable_mosaic.version = 11 : i64} {
  func.func @_cnn_classifier_kernel(%arg0: i32, %arg1: memref<2x8x4xf32, #tpu.memory_space<vmem>>, %arg2: memref<4x32xf32, #tpu.memory_space<vmem>>, %arg3: memref<1x32xf32, #tpu.memory_space<vmem>>, %arg4: memref<96x32xf32, #tpu.memory_space<vmem>>, %arg5: memref<1x32xf32, #tpu.memory_space<vmem>>, %arg6: memref<96x32xf32, #tpu.memory_space<vmem>>, %arg7: memref<1x32xf32, #tpu.memory_space<vmem>>, %arg8: memref<32x128xf32, #tpu.memory_space<vmem>>, %arg9: memref<1x128xf32, #tpu.memory_space<vmem>>, %arg10: memref<2x128xf32, #tpu.memory_space<vmem>>) attributes {dimension_semantics = [#tpu.dimension_semantics<parallel>], iteration_bounds = array<i64: 1>, scalar_prefetch = 0 : i64, scratch_operands = 0 : i64, tpu.core_type = #tpu.core_type<tc>, window_params = [{transform_indices = @transform_0, window_bounds = array<i64: 2, 8, 4>}, {pipeline_mode = #tpu.pipeline_mode<synchronous>, transform_indices = @transform_1, window_bounds = array<i64: 4, 32>}, {pipeline_mode = #tpu.pipeline_mode<synchronous>, transform_indices = @transform_2, window_bounds = array<i64: 1, 32>}, {pipeline_mode = #tpu.pipeline_mode<synchronous>, transform_indices = @transform_3, window_bounds = array<i64: 96, 32>}, {pipeline_mode = #tpu.pipeline_mode<synchronous>, transform_indices = @transform_4, window_bounds = array<i64: 1, 32>}, {pipeline_mode = #tpu.pipeline_mode<synchronous>, transform_indices = @transform_5, window_bounds = array<i64: 96, 32>}, {pipeline_mode = #tpu.pipeline_mode<synchronous>, transform_indices = @transform_6, window_bounds = array<i64: 1, 32>}, {pipeline_mode = #tpu.pipeline_mode<synchronous>, transform_indices = @transform_7, window_bounds = array<i64: 32, 128>}, {pipeline_mode = #tpu.pipeline_mode<synchronous>, transform_indices = @transform_8, window_bounds = array<i64: 1, 128>}, {transform_indices = @transform_9, window_bounds = array<i64: 2, 128>}]} {
    %c0 = arith.constant 0 : index
    %c0_0 = arith.constant 0 : index
    %0 = vector.load %arg3[%c0, %c0_0] : memref<1x32xf32, #tpu.memory_space<vmem>>, vector<1x32xf32>
    %c0_1 = arith.constant 0 : index
    %c0_2 = arith.constant 0 : index
    %1 = vector.load %arg5[%c0_1, %c0_2] : memref<1x32xf32, #tpu.memory_space<vmem>>, vector<1x32xf32>
    %c0_3 = arith.constant 0 : index
    %c0_4 = arith.constant 0 : index
    %2 = vector.load %arg7[%c0_3, %c0_4] : memref<1x32xf32, #tpu.memory_space<vmem>>, vector<1x32xf32>
    %c0_5 = arith.constant 0 : index
    %c0_6 = arith.constant 0 : index
    %3 = vector.load %arg9[%c0_5, %c0_6] : memref<1x128xf32, #tpu.memory_space<vmem>>, vector<1x128xf32>
    %c0_7 = arith.constant 0 : index
    %c0_8 = arith.constant 0 : index
    %c0_9 = arith.constant 0 : index
    %4 = vector.load %arg1[%c0_7, %c0_8, %c0_9] : memref<2x8x4xf32, #tpu.memory_space<vmem>>, vector<2x8x4xf32>
    %5 = vector.shape_cast %4 : vector<2x8x4xf32> to vector<16x4xf32>
    %c0_10 = arith.constant 0 : index
    %c0_11 = arith.constant 0 : index
    %6 = vector.load %arg2[%c0_10, %c0_11] : memref<4x32xf32, #tpu.memory_space<vmem>>, vector<4x32xf32>
    %cst = arith.constant dense<0.000000e+00> : vector<16x32xf32>
    %7 = tpu.matmul %5, %6, %cst {dimension_numbers = #tpu.dot_dimension_numbers<[1], [0], [0], [1], [0, 0, 1, 1], [], []>} : vector<16x4xf32>, vector<4x32xf32>, vector<16x32xf32> -> vector<16x32xf32>
    %8 = vector.broadcast %0 : vector<1x32xf32> to vector<16x32xf32>
    %9 = arith.addf %7, %8 : vector<16x32xf32>
    %cst_12 = arith.constant 0.000000e+00 : f32
    %10 = vector.broadcast %cst_12 : f32 to vector<16x32xf32>
    %11 = arith.maximumf %9, %10 : vector<16x32xf32>
    %12 = vector.shape_cast %11 : vector<16x32xf32> to vector<2x8x32xf32>
    %cst_13 = arith.constant 0.000000e+00 : f32
    %13 = vector.broadcast %cst_13 : f32 to vector<1x32xf32>
    %14 = arith.maximumf %0, %13 : vector<1x32xf32>
    %15 = vector.shape_cast %14 : vector<1x32xf32> to vector<1x1x32xf32>
    %16 = vector.shape_cast %15 : vector<1x1x32xf32> to vector<1x1x32xf32>
    %17 = vector.broadcast %16 : vector<1x1x32xf32> to vector<2x1x32xf32>
    %cst_14 = arith.constant 0.000000e+00 : f32
    %18 = vector.broadcast %cst_14 : f32 to vector<2x1x32xf32>
    %19 = tpu.concatenate %18, %17, %12, %17, %18 in 1 : vector<2x1x32xf32>, vector<2x1x32xf32>, vector<2x8x32xf32>, vector<2x1x32xf32>, vector<2x1x32xf32> -> vector<2x12x32xf32>
    %20 = vector.extract_strided_slice %19 {offsets = [0, 0, 0], sizes = [2, 10, 32], strides = [1, 1, 1]} : vector<2x12x32xf32> to vector<2x10x32xf32>
    %21 = vector.extract_strided_slice %19 {offsets = [0, 1, 0], sizes = [2, 10, 32], strides = [1, 1, 1]} : vector<2x12x32xf32> to vector<2x10x32xf32>
    %22 = vector.extract_strided_slice %19 {offsets = [0, 2, 0], sizes = [2, 10, 32], strides = [1, 1, 1]} : vector<2x12x32xf32> to vector<2x10x32xf32>
    %23 = tpu.concatenate %20, %21, %22 in 2 : vector<2x10x32xf32>, vector<2x10x32xf32>, vector<2x10x32xf32> -> vector<2x10x96xf32>
    %24 = vector.shape_cast %23 : vector<2x10x96xf32> to vector<20x96xf32>
    %c0_15 = arith.constant 0 : index
    %c0_16 = arith.constant 0 : index
    %25 = vector.load %arg4[%c0_15, %c0_16] : memref<96x32xf32, #tpu.memory_space<vmem>>, vector<96x32xf32>
    %cst_17 = arith.constant dense<0.000000e+00> : vector<20x32xf32>
    %26 = tpu.matmul %24, %25, %cst_17 {dimension_numbers = #tpu.dot_dimension_numbers<[1], [0], [0], [1], [0, 0, 1, 1], [], []>} : vector<20x96xf32>, vector<96x32xf32>, vector<20x32xf32> -> vector<20x32xf32>
    %27 = vector.broadcast %1 : vector<1x32xf32> to vector<20x32xf32>
    %28 = arith.addf %26, %27 : vector<20x32xf32>
    %cst_18 = arith.constant 0.000000e+00 : f32
    %29 = vector.broadcast %cst_18 : f32 to vector<20x32xf32>
    %30 = arith.maximumf %28, %29 : vector<20x32xf32>
    %31 = vector.shape_cast %30 : vector<20x32xf32> to vector<2x10x32xf32>
    %32 = tpu.concatenate %18, %31, %18 in 1 : vector<2x1x32xf32>, vector<2x10x32xf32>, vector<2x1x32xf32> -> vector<2x12x32xf32>
    %33 = vector.extract_strided_slice %32 {offsets = [0, 0, 0], sizes = [2, 10, 32], strides = [1, 1, 1]} : vector<2x12x32xf32> to vector<2x10x32xf32>
    %34 = vector.extract_strided_slice %32 {offsets = [0, 1, 0], sizes = [2, 10, 32], strides = [1, 1, 1]} : vector<2x12x32xf32> to vector<2x10x32xf32>
    %35 = vector.extract_strided_slice %32 {offsets = [0, 2, 0], sizes = [2, 10, 32], strides = [1, 1, 1]} : vector<2x12x32xf32> to vector<2x10x32xf32>
    %36 = tpu.concatenate %33, %34, %35 in 2 : vector<2x10x32xf32>, vector<2x10x32xf32>, vector<2x10x32xf32> -> vector<2x10x96xf32>
    %37 = vector.shape_cast %36 : vector<2x10x96xf32> to vector<20x96xf32>
    %c0_19 = arith.constant 0 : index
    %c0_20 = arith.constant 0 : index
    %38 = vector.load %arg6[%c0_19, %c0_20] : memref<96x32xf32, #tpu.memory_space<vmem>>, vector<96x32xf32>
    %cst_21 = arith.constant dense<0.000000e+00> : vector<20x32xf32>
    %39 = tpu.matmul %37, %38, %cst_21 {dimension_numbers = #tpu.dot_dimension_numbers<[1], [0], [0], [1], [0, 0, 1, 1], [], []>} : vector<20x96xf32>, vector<96x32xf32>, vector<20x32xf32> -> vector<20x32xf32>
    %40 = vector.broadcast %2 : vector<1x32xf32> to vector<20x32xf32>
    %41 = arith.addf %39, %40 : vector<20x32xf32>
    %cst_22 = arith.constant 0.000000e+00 : f32
    %42 = vector.broadcast %cst_22 : f32 to vector<20x32xf32>
    %43 = arith.maximumf %41, %42 : vector<20x32xf32>
    %44 = vector.shape_cast %43 : vector<20x32xf32> to vector<2x10x32xf32>
    %cst_23 = arith.constant dense<0.000000e+00> : vector<2x32xf32>
    %45 = vector.multi_reduction <add>, %44, %cst_23 [1] : vector<2x10x32xf32> to vector<2x32xf32>
    %c0_24 = arith.constant 0 : index
    %c0_25 = arith.constant 0 : index
    %46 = vector.load %arg8[%c0_24, %c0_25] : memref<32x128xf32, #tpu.memory_space<vmem>>, vector<32x128xf32>
    %cst_26 = arith.constant dense<0.000000e+00> : vector<2x128xf32>
    %47 = tpu.matmul %45, %46, %cst_26 {dimension_numbers = #tpu.dot_dimension_numbers<[1], [0], [0], [1], [0, 0, 1, 1], [], []>} : vector<2x32xf32>, vector<32x128xf32>, vector<2x128xf32> -> vector<2x128xf32>
    %48 = vector.broadcast %3 : vector<1x128xf32> to vector<2x128xf32>
    %49 = arith.addf %47, %48 : vector<2x128xf32>
    %c0_27 = arith.constant 0 : index
    %c0_28 = arith.constant 0 : index
    %50 = vector.load %arg10[%c0_27, %c0_28] : memref<2x128xf32, #tpu.memory_space<vmem>>, vector<2x128xf32>
    tpu.vector_store %arg10[%c0_27, %c0_28], %49 {strides = array<i32>} : memref<2x128xf32, #tpu.memory_space<vmem>>, vector<2x128xf32>,
    return
  }
  func.func @transform_0(%arg0: i32) -> (i32, i32, i32) {
    %c0_i32 = arith.constant 0 : i32
    %c0_i32_0 = arith.constant 0 : i32
    %c0_i32_1 = arith.constant 0 : i32
    return %arg0, %c0_i32, %c0_i32_0 : i32, i32, i32
  }
  func.func @transform_1(%arg0: i32) -> (i32, i32) {
    %c0_i32 = arith.constant 0 : i32
    %c0_i32_0 = arith.constant 0 : i32
    %c0_i32_1 = arith.constant 0 : i32
    return %c0_i32, %c0_i32_0 : i32, i32
  }
  func.func @transform_2(%arg0: i32) -> (i32, i32) {
    %c0_i32 = arith.constant 0 : i32
    %c0_i32_0 = arith.constant 0 : i32
    %c0_i32_1 = arith.constant 0 : i32
    return %c0_i32, %c0_i32_0 : i32, i32
  }
  func.func @transform_3(%arg0: i32) -> (i32, i32) {
    %c0_i32 = arith.constant 0 : i32
    %c0_i32_0 = arith.constant 0 : i32
    %c0_i32_1 = arith.constant 0 : i32
    return %c0_i32, %c0_i32_0 : i32, i32
  }
  func.func @transform_4(%arg0: i32) -> (i32, i32) {
    %c0_i32 = arith.constant 0 : i32
    %c0_i32_0 = arith.constant 0 : i32
    %c0_i32_1 = arith.constant 0 : i32
    return %c0_i32, %c0_i32_0 : i32, i32
  }
  func.func @transform_5(%arg0: i32) -> (i32, i32) {
    %c0_i32 = arith.constant 0 : i32
    %c0_i32_0 = arith.constant 0 : i32
    %c0_i32_1 = arith.constant 0 : i32
    return %c0_i32, %c0_i32_0 : i32, i32
  }
  func.func @transform_6(%arg0: i32) -> (i32, i32) {
    %c0_i32 = arith.constant 0 : i32
    %c0_i32_0 = arith.constant 0 : i32
    %c0_i32_1 = arith.constant 0 : i32
    return %c0_i32, %c0_i32_0 : i32, i32
  }
  func.func @transform_7(%arg0: i32) -> (i32, i32) {
    %c0_i32 = arith.constant 0 : i32
    %c0_i32_0 = arith.constant 0 : i32
    %c0_i32_1 = arith.constant 0 : i32
    return %c0_i32, %c0_i32_0 : i32, i32
  }
  func.func @transform_8(%arg0: i32) -> (i32, i32) {
    %c0_i32 = arith.constant 0 : i32
    %c0_i32_0 = arith.constant 0 : i32
    %c0_i32_1 = arith.constant 0 : i32
    return %c0_i32, %c0_i32_0 : i32, i32
  }
  func.func @transform_9(%arg0: i32) -> (i32, i32) {
    %c0_i32 = arith.constant 0 : i32
    %c0_i32_0 = arith.constant 0 : i32
    return %arg0, %c0_i32 : i32, i32
  }
}

</mosaic_0001>

<llo_original>
// kernel: tpu_custom_call.1
$region0: #{tpu_custom_call.1}
  #allocation0 [shape = 'u32[]', space=smem, size = 0x4, offset = 0x4, fixed_abs, tag = 'smem constant byte address 0x4 - core index']
  #allocation1 [shape = 'u32[144,128]{1,0:T(1,128)}', space=vmem, size = 0x12000, scoped, tag = 'internal scratch']
  %s0 = inlined_call_operand.vmem [shape: f32[2,8,4], index: 0, kind: input, shape index: {}]
  %s1 = inlined_call_operand.vmem [shape: f32[4,32], index: 1, kind: input, shape index: {}]
  %s2 = inlined_call_operand.vmem [shape: f32[1,32], index: 2, kind: input, shape index: {}]
  %s3 = inlined_call_operand.vmem [shape: f32[96,32], index: 3, kind: input, shape index: {}]
  %s4 = inlined_call_operand.vmem [shape: f32[1,32], index: 4, kind: input, shape index: {}]
  %s5 = inlined_call_operand.vmem [shape: f32[96,32], index: 5, kind: input, shape index: {}]
  %s6 = inlined_call_operand.vmem [shape: f32[1,32], index: 6, kind: input, shape index: {}]
  %s7 = inlined_call_operand.vmem [shape: f32[32,128], index: 7, kind: input, shape index: {}]
  %s8 = inlined_call_operand.vmem [shape: f32[1,128], index: 8, kind: input, shape index: {}]
  %s9 = inlined_call_operand.hbm [shape: f32[2,128], index: 9, kind: output, shape index: {}]
  %s10 = sld [smem:[#allocation0]]
  $region46: #{tpu_custom_call.1} parent=0
    _
  %s12 = ssub.s32 1, %s10
  %s13 = scalar_select 0, %s12, %s10
  $region1: #{tpu_custom_call.1} parent=0
    #allocation2 [shape = 'u8[1024]{0}', space=vmem, size = 0x400, scoped, tag = 'output window, operand 0, single buffered']
    #allocation3 [shape = 's32[1]{0}', space=sflag, size = 0x4, scoped, tag = 'scoped memory for tpu_custom_call.1']
    %14 = vsyncpa [#allocation3], 0
    // Predicated region
    $region2: #{tpu_custom_call.1} parent=1 // pred_check
      _
    $region3: #{tpu_custom_call.1} parent=1 // pred_check_branch
      %16 = sbr.rel (0) target = $region5
    $region4: #{tpu_custom_call.1} parent=1 // pred_region
      _
    $region5: #{tpu_custom_call.1} parent=1 // pred_fallthru
      _
    // Predicated region
    $region6: #{tpu_custom_call.1} parent=1 // pred_check
      _
    $region7: #{tpu_custom_call.1} parent=1 // pred_check_branch
      %18 = sbr.rel (0) target = $region9
    $region8: #{tpu_custom_call.1} parent=1 // pred_region
      _
    $region9: #{tpu_custom_call.1} parent=1 // pred_fallthru
      _
    // Predicated region
    $region10: #{tpu_custom_call.1} parent=1 // pred_check
      _
    $region11: #{tpu_custom_call.1} parent=1 // pred_check_branch
      %20 = sbr.rel (0) target = $region13
    $region12: #{tpu_custom_call.1} parent=1 // pred_region
      _
    $region13: #{tpu_custom_call.1} parent=1 // pred_fallthru
      _
    // Predicated region
    $region14: #{tpu_custom_call.1} parent=1 // pred_check
      _
    $region15: #{tpu_custom_call.1} parent=1 // pred_check_branch
      %22 = sbr.rel (0) target = $region17
    $region16: #{tpu_custom_call.1} parent=1 // pred_region
      _
    $region17: #{tpu_custom_call.1} parent=1 // pred_fallthru
      _
    // Predicated region
    $region18: #{tpu_custom_call.1} parent=1 // pred_check
      _
    $region19: #{tpu_custom_call.1} parent=1 // pred_check_branch
      %24 = sbr.rel (0) target = $region21
    $region20: #{tpu_custom_call.1} parent=1 // pred_region
      _
    $region21: #{tpu_custom_call.1} parent=1 // pred_fallthru
      _
    // Predicated region
    $region22: #{tpu_custom_call.1} parent=1 // pred_check
      _
    $region23: #{tpu_custom_call.1} parent=1 // pred_check_branch
      %26 = sbr.rel (0) target = $region25
    $region24: #{tpu_custom_call.1} parent=1 // pred_region
      _
    $region25: #{tpu_custom_call.1} parent=1 // pred_fallthru
      _
    // Predicated region
    $region26: #{tpu_custom_call.1} parent=1 // pred_check
      _
    $region27: #{tpu_custom_call.1} parent=1 // pred_check_branch
      %28 = sbr.rel (0) target = $region29
    $region28: #{tpu_custom_call.1} parent=1 // pred_region
      _
    $region29: #{tpu_custom_call.1} parent=1 // pred_fallthru
      _
    // Predicated region
    $region30: #{tpu_custom_call.1} parent=1 // pred_check
      _
    $region31: #{tpu_custom_call.1} parent=1 // pred_check_branch
      %30 = sbr.rel (0) target = $region33
    $region32: #{tpu_custom_call.1} parent=1 // pred_region
      _
    $region33: #{tpu_custom_call.1} parent=1 // pred_fallthru
      _
    // Predicated region
    $region34: #{tpu_custom_call.1} parent=1 // pred_check
      _
    $region35: #{tpu_custom_call.1} parent=1 // pred_check_branch
      %32 = sbr.rel (0) target = $region37
    $region36: #{tpu_custom_call.1} parent=1 // pred_region
      _
    $region37: #{tpu_custom_call.1} parent=1 // pred_fallthru
      _
    %v33 = vld [vmem:[%s2] sm:$0x1]
    %v34 = vld [vmem:[%s4] sm:$0x1]
    %v35 = vld [vmem:[%s6] sm:$0x1]
    %v36 = vld [vmem:[%s8] sm:$0x1]
    %v37 = vld [vmem:[%s0] sm:$0xff]
    %v38 = vld [vmem:[%s0 + $0x8] sm:$0xff]
    %v39 = vld [vmem:[%s1] sm:$0xf]
    %v41 = vlaneseq
    %v42 = vshrl.u32 %v41, 7
    %v43 = vsub.s32 0, %v42
    %v44 = vrot.slane %v33, %v43
    %vm46 = vcmask 31744
    %v48 = vsel %vm46, %v37, 0
    %v51 = vsel %vm46, %v38, 0
    %vm53 = vcmask 1043456
    %v55 = vsel %vm53, %v39, 0
    %57 = vmatprep.subr.mxu0 0.0
    %58 = vmatpush1.msra.mxu0 0.0
    %59 = vmatprep.subr.mxu0 0.0
    %60 = vmatpush1.msra.mxu0 0.0
    %61 = vmatprep.subr.mxu0 0.0
    %62 = vmatpush1.msra.mxu0 0.0
    %63 = vmatprep.subr.mxu0 0.0
    %64 = vmatpush1.msra.mxu0 0.0
    %65 = vmatprep.subr.mxu0 0.0
    %66 = vmatpush1.msra.mxu0 0.0
    %67 = vmatprep.subr.mxu0 0.0
    %68 = vmatpush1.msra.mxu0 0.0
    %69 = vmatprep.subr.mxu0 0.0
    %70 = vmatpush1.msra.mxu0 0.0
    %71 = vmatprep.subr.mxu0 0.0
    %72 = vmatpush1.msra.mxu0 0.0
    %73 = vmatprep.subr.mxu0 0.0
    %74 = vmatpush1.msra.mxu0 0.0
    %75 = vmatprep.subr.mxu0 0.0
    %76 = vmatpush1.msra.mxu0 0.0
    %77 = vmatprep.subr.mxu0 0.0
    %78 = vmatpush1.msra.mxu0 0.0
    %79 = vmatprep.subr.mxu0 0.0
    %80 = vmatpush1.msra.mxu0 0.0
    %81 = vmatprep.subr.mxu0 0.0
    %82 = vmatpush1.msra.mxu0 0.0
    %83 = vmatprep.subr.mxu0 0.0
    %84 = vmatpush1.msra.mxu0 0.0
    %85 = vmatprep.subr.mxu0 0.0
    %86 = vmatpush1.msra.mxu0 0.0
    %87 = vmatprep.subr.mxu0 0.0
    %88 = vmatpush1.msra.mxu0 %v55
    %89 = vmatprep.subr.mxu0 0.0
    %90 = vmatpush2.msra.mxu0 0.0
    %91 = vmatprep.subr.mxu0 0.0
    %92 = vmatpush2.msra.mxu0 0.0
    %93 = vmatprep.subr.mxu0 0.0
    %94 = vmatpush2.msra.mxu0 0.0
    %95 = vmatprep.subr.mxu0 0.0
    %96 = vmatpush2.msra.mxu0 0.0
    %97 = vmatprep.subr.mxu0 0.0
    %98 = vmatpush2.msra.mxu0 0.0
    %99 = vmatprep.subr.mxu0 0.0
    %100 = vmatpush2.msra.mxu0 0.0
    %101 = vmatprep.subr.mxu0 0.0
    %102 = vmatpush2.msra.mxu0 0.0
    %103 = vmatprep.subr.mxu0 0.0
    %104 = vmatpush2.msra.mxu0 0.0
    %105 = vmatprep.subr.mxu0 0.0
    %106 = vmatpush2.msra.mxu0 0.0
    %107 = vmatprep.subr.mxu0 0.0
    %108 = vmatpush2.msra.mxu0 0.0
    %109 = vmatprep.subr.mxu0 0.0
    %110 = vmatpush2.msra.mxu0 0.0
    %111 = vmatprep.subr.mxu0 0.0
    %112 = vmatpush2.msra.mxu0 0.0
    %113 = vmatprep.subr.mxu0 0.0
    %114 = vmatpush2.msra.mxu0 0.0
    %115 = vmatprep.subr.mxu0 0.0
    %116 = vmatpush2.msra.mxu0 0.0
    %117 = vmatprep.subr.mxu0 0.0
    %118 = vmatpush2.msra.mxu0 0.0
    %119 = vmatprep.subr.mxu0 0.0
    %120 = vmatpush2.msra.mxu0 0.0
    %121 = vmatprep.mubr.f32.mxu0 0.0
    %122 = vmatmul.mubr.f32.gmra.mxu0 %v48
    %v123 = vpop.f32.mrf.mxu0
    %v124 = vadd.f32 %v44, %v123
    %v125 = vpop.f32.mrf.mxu0
    %126 = vmatprep.mubr.f32.mxu0 0.0
    %127 = vmatmul.mubr.f32.gmra.mxu0 %v51
    %v128 = vpop.f32.mrf.mxu0
    %v129 = vadd.f32 %v44, %v128
    %v130 = vpop.f32.mrf.mxu0
    %131 = vdwg.mxu0
    %v132 = vmax.f32 %v124, 0.0
    %v133 = vmax.f32 %v129, 0.0
    %v134 = vmax.f32 %v33, 0.0
    %v136 = vlaneseq
    %v137 = vshrl.u32 %v136, 7
    %v138 = vsub.s32 0, %v137
    %v139 = vrot.slane %v134, %v138
    %v143 = vrot.slane %v132, 6
    %v144 = vrot.slane %v133, 6
    %vm147 = vcmask 1040384
    %v148 = vsel %vm147, 0.0, %v139
    %vm149 = vcmask 1041408
    %v150 = vsel %vm149, %v148, %v143
    %v151 = vsel %vm149, %v148, %v144
    %v152 = vsel %vm149, %v143, %v139
    %v153 = vsel %vm149, %v144, %v139
    %vm154 = vcmask 1042432
    %v155 = vsel %vm154, %v152, 0.0
    %v156 = vsel %vm154, %v153, 0.0
    %vm161 = vcmask 1046528
    %v162 = vrot.slane %v150, 1
    %v163 = vrot.slane %v155, 1
    %v164 = vsel %vm161, %v162, %v163
    %v165 = vrot.slane %v151, 1
    %v166 = vrot.slane %v156, 1
    %v167 = vsel %vm161, %v165, %v166
    %168 = vrot.lane.b32.xlu0 %v164, 32
    %v169 = vpop.permute.xlu0 %168
    %170 = vrot.lane.b32.xlu0 %v163, 32
    %v171 = vpop.permute.xlu0 %170
    %172 = vrot.lane.b32.xlu0 %v167, 32
    %v173 = vpop.permute.xlu0 %172
    %174 = vrot.lane.b32.xlu0 %v166, 32
    %v175 = vpop.permute.xlu0 %174
    %vm180 = vcmask 1045504
    %v181 = vrot.slane %v150, 2
    %v182 = vrot.slane %v155, 2
    %v183 = vsel %vm180, %v181, %v182
    %v184 = vrot.slane %v151, 2
    %v185 = vrot.slane %v156, 2
    %v186 = vsel %vm180, %v184, %v185
    %187 = vrot.lane.b32.xlu0 %v183, 64
    %v188 = vpop.permute.xlu0 %187
    %189 = vrot.lane.b32.xlu0 %v182, 64
    %v190 = vpop.permute.xlu0 %189
    %191 = vrot.lane.b32.xlu0 %v186, 64
    %v192 = vpop.permute.xlu0 %191
    %193 = vrot.lane.b32.xlu0 %v185, 64
    %v194 = vpop.permute.xlu0 %193
    %vm199 = vcmask 261120
    %v200 = vsel %vm199, %v150, %v169
    %v201 = vsel %vm199, %v155, %v171
    %v202 = vsel %vm199, %v151, %v173
    %v203 = vsel %vm199, %v156, %v175
    %vm204 = vcmask 523264
    %v205 = vsel %vm204, %v200, %v188
    %v206 = vsel %vm204, %v201, %v190
    %v207 = vsel %vm204, %v202, %v192
    %v208 = vsel %vm204, %v203, %v194
    %v213 = vcombine.high %v205, %v205
    %v215 = vunpack.c.l.s4 1983009808
    %v216 = vunpack.c.0.s8 %v215
    %v217 = vlaneseq
    %v218 = vshrl.u32 %v217, 7
    %v219 = vsub.s32 %v216, %v218
    %v220 = vrot.slane %v205, %v219
    %v222 = vunpack.c.l.s4 1983009808
    %v223 = vunpack.c.0.s8 %v222
    %v224 = vlaneseq
    %v225 = vshrl.u32 %v224, 7
    %v226 = vsub.s32 %v223, %v225
    %v227 = vrot.slane %v213, %v226
    %v228 = vcombine.high %v220, %v220
    %v229 = vcombine.high %v227, %v227
    %v231 = vunpack.c.l.s4 1983009808
    %v232 = vunpack.c.0.s8 %v231
    %v233 = vlaneseq
    %v234 = vshrl.u32 %v233, 7
    %v235 = vsub.s32 %v232, %v234
    %v236 = vrot.slane %v206, %v235
    %v237 = vcombine.high %v207, %v207
    %v239 = vunpack.c.l.s4 1983009808
    %v240 = vunpack.c.0.s8 %v239
    %v241 = vlaneseq
    %v242 = vshrl.u32 %v241, 7
    %v243 = vsub.s32 %v240, %v242
    %v244 = vrot.slane %v207, %v243
    %v246 = vunpack.c.l.s4 1983009808
    %v247 = vunpack.c.0.s8 %v246
    %v248 = vlaneseq
    %v249 = vshrl.u32 %v248, 7
    %v250 = vsub.s32 %v247, %v249
    %v251 = vrot.slane %v237, %v250
    %v252 = vcombine.high %v244, %v244
    %v253 = vcombine.high %v251, %v251
    %v255 = vunpack.c.l.s4 1983009808
    %v256 = vunpack.c.0.s8 %v255
    %v257 = vlaneseq
    %v258 = vshrl.u32 %v257, 7
    %v259 = vsub.s32 %v256, %v258
    %v260 = vrot.slane %v208, %v259
    %v261 = vld [vmem:[%s3] sm:$0xff]
    %v262 = vld [vmem:[%s3 + $0x8] sm:$0xff]
    %v263 = vld [vmem:[%s3 + $0x10] sm:$0xff]
    %v264 = vld [vmem:[%s3 + $0x18] sm:$0xff]
    %v265 = vld [vmem:[%s3 + $0x20] sm:$0xff]
    %v266 = vld [vmem:[%s3 + $0x28] sm:$0xff]
    %v267 = vld [vmem:[%s3 + $0x30] sm:$0xff]
    %v268 = vld [vmem:[%s3 + $0x38] sm:$0xff]
    %v269 = vld [vmem:[%s3 + $0x40] sm:$0xff]
    %v270 = vld [vmem:[%s3 + $0x48] sm:$0xff]
    %v271 = vld [vmem:[%s3 + $0x50] sm:$0xff]
    %v272 = vld [vmem:[%s3 + $0x58] sm:$0xff]
    %v274 = vlaneseq
    %v275 = vshrl.u32 %v274, 7
    %v276 = vsub.s32 0, %v275
    %v277 = vrot.slane %v34, %v276
    %v279 = vcombine.low %v220, %v228
    %v280 = vcombine.low %v227, %v229
    %v282 = vunpack.c.l.s4 1983009808
    %v283 = vunpack.c.0.s8 %v282
    %v284 = vlaneseq
    %v285 = vshrl.u32 %v284, 7
    %v286 = vsub.s32 %v283, %v285
    %v287 = vrot.slane %v279, %v286
    %v289 = vunpack.c.l.s4 1983009808
    %v290 = vunpack.c.0.s8 %v289
    %v291 = vlaneseq
    %v292 = vshrl.u32 %v291, 7
    %v293 = vsub.s32 %v290, %v292
    %v294 = vrot.slane %v280, %v293
    %v295 = vcombine.low %v287, %v294
    %v296 = vcombine.low %v236, %v244
    %v297 = vcombine.low %v252, %v251
    %v299 = vunpack.c.l.s4 1983009808
    %v300 = vunpack.c.0.s8 %v299
    %v301 = vlaneseq
    %v302 = vshrl.u32 %v301, 7
    %v303 = vsub.s32 %v300, %v302
    %v304 = vrot.slane %v296, %v303
    %v306 = vunpack.c.l.s4 1983009808
    %v307 = vunpack.c.0.s8 %v306
    %v308 = vlaneseq
    %v309 = vshrl.u32 %v308, 7
    %v310 = vsub.s32 %v307, %v309
    %v311 = vrot.slane %v297, %v310
    %v312 = vcombine.low %v304, %v311
    %v313 = vcombine.low %v253, %v260
    %v315 = vunpack.c.l.s4 1983009808
    %v316 = vunpack.c.0.s8 %v315
    %v317 = vlaneseq
    %v318 = vshrl.u32 %v317, 7
    %v319 = vsub.s32 %v316, %v318
    %v320 = vrot.slane %v313, %v319
    %vm321 = vcmask 785408
    %v322 = vsel %vm321, %v295, 0
    %v324 = vsel %vm321, %v312, 0
    %v326 = vsel %vm321, %v320, 0
    %328 = vmatprep.subr.mxu0 0.0
    %329 = vmatpush1.msra.mxu0 0.0
    %330 = vmatprep.subr.mxu0 0.0
    %331 = vmatpush1.msra.mxu0 0.0
    %332 = vmatprep.subr.mxu0 0.0
    %333 = vmatpush1.msra.mxu0 0.0
    %334 = vmatprep.subr.mxu0 0.0
    %335 = vmatpush1.msra.mxu0 0.0
    %336 = vmatprep.subr.mxu0 0.0
    %337 = vmatpush1.msra.mxu0 %v272
    %338 = vmatprep.subr.mxu0 0.0
    %339 = vmatpush1.msra.mxu0 %v271
    %340 = vmatprep.subr.mxu0 0.0
    %341 = vmatpush1.msra.mxu0 %v270
    %342 = vmatprep.subr.mxu0 0.0
    %343 = vmatpush1.msra.mxu0 %v269
    %344 = vmatprep.subr.mxu0 0.0
    %345 = vmatpush1.msra.mxu0 %v268
    %346 = vmatprep.subr.mxu0 0.0
    %347 = vmatpush1.msra.mxu0 %v267
    %348 = vmatprep.subr.mxu0 0.0
    %349 = vmatpush1.msra.mxu0 %v266
    %350 = vmatprep.subr.mxu0 0.0
    %351 = vmatpush1.msra.mxu0 %v265
    %352 = vmatprep.subr.mxu0 0.0
    %353 = vmatpush1.msra.mxu0 %v264
    %354 = vmatprep.subr.mxu0 0.0
    %355 = vmatpush1.msra.mxu0 %v263
    %356 = vmatprep.subr.mxu0 0.0
    %357 = vmatpush1.msra.mxu0 %v262
    %358 = vmatprep.subr.mxu0 0.0
    %359 = vmatpush1.msra.mxu0 %v261
    %360 = vmatprep.subr.mxu0 0.0
    %361 = vmatpush2.msra.mxu0 0.0
    %362 = vmatprep.subr.mxu0 0.0
    %363 = vmatpush2.msra.mxu0 0.0
    %364 = vmatprep.subr.mxu0 0.0
    %365 = vmatpush2.msra.mxu0 0.0
    %366 = vmatprep.subr.mxu0 0.0
    %367 = vmatpush2.msra.mxu0 0.0
    %368 = vmatprep.subr.mxu0 0.0
    %369 = vmatpush2.msra.mxu0 0.0
    %370 = vmatprep.subr.mxu0 0.0
    %371 = vmatpush2.msra.mxu0 0.0
    %372 = vmatprep.subr.mxu0 0.0
    %373 = vmatpush2.msra.mxu0 0.0
    %374 = vmatprep.subr.mxu0 0.0
    %375 = vmatpush2.msra.mxu0 0.0
    %376 = vmatprep.subr.mxu0 0.0
    %377 = vmatpush2.msra.mxu0 0.0
    %378 = vmatprep.subr.mxu0 0.0
    %379 = vmatpush2.msra.mxu0 0.0
    %380 = vmatprep.subr.mxu0 0.0
    %381 = vmatpush2.msra.mxu0 0.0
    %382 = vmatprep.subr.mxu0 0.0
    %383 = vmatpush2.msra.mxu0 0.0
    %384 = vmatprep.subr.mxu0 0.0
    %385 = vmatpush2.msra.mxu0 0.0
    %386 = vmatprep.subr.mxu0 0.0
    %387 = vmatpush2.msra.mxu0 0.0
    %388 = vmatprep.subr.mxu0 0.0
    %389 = vmatpush2.msra.mxu0 0.0
    %390 = vmatprep.subr.mxu0 0.0
    %391 = vmatpush2.msra.mxu0 0.0
    %392 = vmatprep.mubr.f32.mxu0 0.0
    %393 = vmatmul.mubr.f32.gmra.mxu0 %v322
    %v394 = vpop.f32.mrf.mxu0
    %v395 = vadd.f32 %v277, %v394
    %v396 = vpop.f32.mrf.mxu0
    %397 = vmatprep.mubr.f32.mxu0 0.0
    %398 = vmatmul.mubr.f32.gmra.mxu0 %v324
    %v399 = vpop.f32.mrf.mxu0
    %v400 = vadd.f32 %v277, %v399
    %v401 = vpop.f32.mrf.mxu0
    %402 = vmatprep.mubr.f32.mxu0 0.0
    %403 = vmatmul.mubr.f32.gmra.mxu0 %v326
    %v404 = vpop.f32.mrf.mxu0
    %v405 = vadd.f32 %v277, %v404
    %v406 = vpop.f32.mrf.mxu0
    %407 = vdwg.mxu0
    %v408 = vmax.f32 %v395, 0.0
    %v409 = vmax.f32 %v400, 0.0
    %v410 = vmax.f32 %v405, 0.0
    %v414 = vcombine.high %v408, %v408
    %v416 = vunpack.c.l.s4 1983009808
    %v417 = vunpack.c.0.s8 %v416
    %v418 = vlaneseq
    %v419 = vshrl.u32 %v418, 7
    %v420 = vsub.s32 %v417, %v419
    %v421 = vrot.slane %v408, %v420
    %v423 = vunpack.c.l.s4 1983009808
    %v424 = vunpack.c.0.s8 %v423
    %v425 = vlaneseq
    %v426 = vshrl.u32 %v425, 7
    %v427 = vsub.s32 %v424, %v426
    %v428 = vrot.slane %v414, %v427
    %v429 = vcombine.high %v421, %v421
    %v430 = vcombine.high %v428, %v428
    %v431 = vcombine.high %v409, %v409
    %v433 = vunpack.c.l.s4 1983009808
    %v434 = vunpack.c.0.s8 %v433
    %v435 = vlaneseq
    %v436 = vshrl.u32 %v435, 7
    %v437 = vsub.s32 %v434, %v436
    %v438 = vrot.slane %v409, %v437
    %v440 = vunpack.c.l.s4 1983009808
    %v441 = vunpack.c.0.s8 %v440
    %v442 = vlaneseq
    %v443 = vshrl.u32 %v442, 7
    %v444 = vsub.s32 %v441, %v443
    %v445 = vrot.slane %v431, %v444
    %v446 = vcombine.high %v438, %v438
    %v447 = vcombine.high %v445, %v445
    %v449 = vunpack.c.l.s4 1983009808
    %v450 = vunpack.c.0.s8 %v449
    %v451 = vlaneseq
    %v452 = vshrl.u32 %v451, 7
    %v453 = vsub.s32 %v450, %v452
    %v454 = vrot.slane %v410, %v453
    %v455 = vcombine.high %v454, %v454
    %v456 = vcombine.low %v421, %v429
    %v457 = vcombine.low %v428, %v430
    %v459 = vunpack.c.l.s4 1983009808
    %v460 = vunpack.c.0.s8 %v459
    %v461 = vlaneseq
    %v462 = vshrl.u32 %v461, 7
    %v463 = vsub.s32 %v460, %v462
    %v464 = vrot.slane %v456, %v463
    %v466 = vunpack.c.l.s4 1983009808
    %v467 = vunpack.c.0.s8 %v466
    %v468 = vlaneseq
    %v469 = vshrl.u32 %v468, 7
    %v470 = vsub.s32 %v467, %v469
    %v471 = vrot.slane %v457, %v470
    %v472 = vcombine.low %v464, %v471
    %v474 = vunpack.c.l.s4 1983009808
    %v475 = vunpack.c.0.s8 %v474
    %v476 = vlaneseq
    %v477 = vshrl.u32 %v476, 7
    %v478 = vsub.s32 %v475, %v477
    %v479 = vrot.slane %v438, %v478
    %v480 = vcombine.low %v446, %v445
    %v481 = vcombine.low %v447, %v454
    %v483 = vunpack.c.l.s4 1983009808
    %v484 = vunpack.c.0.s8 %v483
    %v485 = vlaneseq
    %v486 = vshrl.u32 %v485, 7
    %v487 = vsub.s32 %v484, %v486
    %v488 = vrot.slane %v480, %v487
    %v490 = vunpack.c.l.s4 1983009808
    %v491 = vunpack.c.0.s8 %v490
    %v492 = vlaneseq
    %v493 = vshrl.u32 %v492, 7
    %v494 = vsub.s32 %v491, %v493
    %v495 = vrot.slane %v481, %v494
    %v496 = vcombine.low %v488, %v495
    %v498 = vunpack.c.l.s4 1983009808
    %v499 = vunpack.c.0.s8 %v498
    %v500 = vlaneseq
    %v501 = vshrl.u32 %v500, 7
    %v502 = vsub.s32 %v499, %v501
    %v503 = vrot.slane %v455, %v502
    %v504 = vrot.slane %v472, 7
    %v505 = vrot.slane %v479, 7
    %v506 = vsel %vm147, %v504, %v505
    %v507 = vrot.slane %v496, 7
    %v508 = vrot.slane %v503, 7
    %v509 = vsel %vm147, %v507, %v508
    %v514 = vsel %vm147, 0.0, %v504
    %v515 = vsel %vm147, 0.0, %v507
    %v516 = vsel %vm154, %v506, 0.0
    %v517 = vsel %vm154, %v509, 0.0
    %v522 = vrot.slane %v514, 1
    %v523 = vrot.slane %v516, 1
    %v524 = vsel %vm161, %v522, %v523
    %v525 = vrot.slane %v515, 1
    %v526 = vrot.slane %v517, 1
    %v527 = vsel %vm161, %v525, %v526
    %528 = vrot.lane.b32.xlu0 %v524, 32
    %v529 = vpop.permute.xlu0 %528
    %530 = vrot.lane.b32.xlu0 %v523, 32
    %v531 = vpop.permute.xlu0 %530
    %532 = vrot.lane.b32.xlu0 %v527, 32
    %v533 = vpop.permute.xlu0 %532
    %534 = vrot.lane.b32.xlu0 %v526, 32
    %v535 = vpop.permute.xlu0 %534
    %v540 = vrot.slane %v514, 2
    %v541 = vrot.slane %v516, 2
    %v542 = vsel %vm180, %v540, %v541
    %v543 = vrot.slane %v515, 2
    %v544 = vrot.slane %v517, 2
    %v545 = vsel %vm180, %v543, %v544
    %546 = vrot.lane.b32.xlu0 %v542, 64
    %v547 = vpop.permute.xlu0 %546
    %548 = vrot.lane.b32.xlu0 %v541, 64
    %v549 = vpop.permute.xlu0 %548
    %550 = vrot.lane.b32.xlu0 %v545, 64
    %v551 = vpop.permute.xlu0 %550
    %552 = vrot.lane.b32.xlu0 %v544, 64
    %v553 = vpop.permute.xlu0 %552
    %v558 = vsel %vm199, %v514, %v529
    %v559 = vsel %vm199, %v516, %v531
    %v560 = vsel %vm199, %v515, %v533
    %v561 = vsel %vm199, %v517, %v535
    %v562 = vsel %vm204, %v558, %v547
    %v563 = vsel %vm204, %v559, %v549
    %v564 = vsel %vm204, %v560, %v551
    %v565 = vsel %vm204, %v561, %v553
    %v570 = vcombine.high %v562, %v562
    %v572 = vunpack.c.l.s4 1983009808
    %v573 = vunpack.c.0.s8 %v572
    %v574 = vlaneseq
    %v575 = vshrl.u32 %v574, 7
    %v576 = vsub.s32 %v573, %v575
    %v577 = vrot.slane %v562, %v576
    %v579 = vunpack.c.l.s4 1983009808
    %v580 = vunpack.c.0.s8 %v579
    %v581 = vlaneseq
    %v582 = vshrl.u32 %v581, 7
    %v583 = vsub.s32 %v580, %v582
    %v584 = vrot.slane %v570, %v583
    %v585 = vcombine.high %v577, %v577
    %v586 = vcombine.high %v584, %v584
    %v588 = vunpack.c.l.s4 1983009808
    %v589 = vunpack.c.0.s8 %v588
    %v590 = vlaneseq
    %v591 = vshrl.u32 %v590, 7
    %v592 = vsub.s32 %v589, %v591
    %v593 = vrot.slane %v563, %v592
    %v594 = vcombine.high %v564, %v564
    %v596 = vunpack.c.l.s4 1983009808
    %v597 = vunpack.c.0.s8 %v596
    %v598 = vlaneseq
    %v599 = vshrl.u32 %v598, 7
    %v600 = vsub.s32 %v597, %v599
    %v601 = vrot.slane %v564, %v600
    %v603 = vunpack.c.l.s4 1983009808
    %v604 = vunpack.c.0.s8 %v603
    %v605 = vlaneseq
    %v606 = vshrl.u32 %v605, 7
    %v607 = vsub.s32 %v604, %v606
    %v608 = vrot.slane %v594, %v607
    %v609 = vcombine.high %v601, %v601
    %v610 = vcombine.high %v608, %v608
    %v612 = vunpack.c.l.s4 1983009808
    %v613 = vunpack.c.0.s8 %v612
    %v614 = vlaneseq
    %v615 = vshrl.u32 %v614, 7
    %v616 = vsub.s32 %v613, %v615
    %v617 = vrot.slane %v565, %v616
    %v618 = vld [vmem:[%s5] sm:$0xff]
    %v619 = vld [vmem:[%s5 + $0x8] sm:$0xff]
    %v620 = vld [vmem:[%s5 + $0x10] sm:$0xff]
    %v621 = vld [vmem:[%s5 + $0x18] sm:$0xff]
    %v622 = vld [vmem:[%s5 + $0x20] sm:$0xff]
    %v623 = vld [vmem:[%s5 + $0x28] sm:$0xff]
    %v624 = vld [vmem:[%s5 + $0x30] sm:$0xff]
    %v625 = vld [vmem:[%s5 + $0x38] sm:$0xff]
    %v626 = vld [vmem:[%s5 + $0x40] sm:$0xff]
    %v627 = vld [vmem:[%s5 + $0x48] sm:$0xff]
    %v628 = vld [vmem:[%s5 + $0x50] sm:$0xff]
    %v629 = vld [vmem:[%s5 + $0x58] sm:$0xff]
    %v631 = vlaneseq
    %v632 = vshrl.u32 %v631, 7
    %v633 = vsub.s32 0, %v632
    %v634 = vrot.slane %v35, %v633
    %v636 = vcombine.low %v577, %v585
    %v637 = vcombine.low %v584, %v586
    %v639 = vunpack.c.l.s4 1983009808
    %v640 = vunpack.c.0.s8 %v639
    %v641 = vlaneseq
    %v642 = vshrl.u32 %v641, 7
    %v643 = vsub.s32 %v640, %v642
    %v644 = vrot.slane %v636, %v643
    %v646 = vunpack.c.l.s4 1983009808
    %v647 = vunpack.c.0.s8 %v646
    %v648 = vlaneseq
    %v649 = vshrl.u32 %v648, 7
    %v650 = vsub.s32 %v647, %v649
    %v651 = vrot.slane %v637, %v650
    %v652 = vcombine.low %v644, %v651
    %v653 = vcombine.low %v593, %v601
    %v654 = vcombine.low %v609, %v608
    %v656 = vunpack.c.l.s4 1983009808
    %v657 = vunpack.c.0.s8 %v656
    %v658 = vlaneseq
    %v659 = vshrl.u32 %v658, 7
    %v660 = vsub.s32 %v657, %v659
    %v661 = vrot.slane %v653, %v660
    %v663 = vunpack.c.l.s4 1983009808
    %v664 = vunpack.c.0.s8 %v663
    %v665 = vlaneseq
    %v666 = vshrl.u32 %v665, 7
    %v667 = vsub.s32 %v664, %v666
    %v668 = vrot.slane %v654, %v667
    %v669 = vcombine.low %v661, %v668
    %v670 = vcombine.low %v610, %v617
    %v672 = vunpack.c.l.s4 1983009808
    %v673 = vunpack.c.0.s8 %v672
    %v674 = vlaneseq
    %v675 = vshrl.u32 %v674, 7
    %v676 = vsub.s32 %v673, %v675
    %v677 = vrot.slane %v670, %v676
    %v678 = vsel %vm321, %v652, 0
    %v680 = vsel %vm321, %v669, 0
    %v682 = vsel %vm321, %v677, 0
    %684 = vmatprep.subr.mxu0 0.0
    %685 = vmatpush1.msra.mxu0 0.0
    %686 = vmatprep.subr.mxu0 0.0
    %687 = vmatpush1.msra.mxu0 0.0
    %688 = vmatprep.subr.mxu0 0.0
    %689 = vmatpush1.msra.mxu0 0.0
    %690 = vmatprep.subr.mxu0 0.0
    %691 = vmatpush1.msra.mxu0 0.0
    %692 = vmatprep.subr.mxu0 0.0
    %693 = vmatpush1.msra.mxu0 %v629
    %694 = vmatprep.subr.mxu0 0.0
    %695 = vmatpush1.msra.mxu0 %v628
    %696 = vmatprep.subr.mxu0 0.0
    %697 = vmatpush1.msra.mxu0 %v627
    %698 = vmatprep.subr.mxu0 0.0
    %699 = vmatpush1.msra.mxu0 %v626
    %700 = vmatprep.subr.mxu0 0.0
    %701 = vmatpush1.msra.mxu0 %v625
    %702 = vmatprep.subr.mxu0 0.0
    %703 = vmatpush1.msra.mxu0 %v624
    %704 = vmatprep.subr.mxu0 0.0
    %705 = vmatpush1.msra.mxu0 %v623
    %706 = vmatprep.subr.mxu0 0.0
    %707 = vmatpush1.msra.mxu0 %v622
    %708 = vmatprep.subr.mxu0 0.0
    %709 = vmatpush1.msra.mxu0 %v621
    %710 = vmatprep.subr.mxu0 0.0
    %711 = vmatpush1.msra.mxu0 %v620
    %712 = vmatprep.subr.mxu0 0.0
    %713 = vmatpush1.msra.mxu0 %v619
    %714 = vmatprep.subr.mxu0 0.0
    %715 = vmatpush1.msra.mxu0 %v618
    %716 = vmatprep.subr.mxu0 0.0
    %717 = vmatpush2.msra.mxu0 0.0
    %718 = vmatprep.subr.mxu0 0.0
    %719 = vmatpush2.msra.mxu0 0.0
    %720 = vmatprep.subr.mxu0 0.0
    %721 = vmatpush2.msra.mxu0 0.0
    %722 = vmatprep.subr.mxu0 0.0
    %723 = vmatpush2.msra.mxu0 0.0
    %724 = vmatprep.subr.mxu0 0.0
    %725 = vmatpush2.msra.mxu0 0.0
    %726 = vmatprep.subr.mxu0 0.0
    %727 = vmatpush2.msra.mxu0 0.0
    %728 = vmatprep.subr.mxu0 0.0
    %729 = vmatpush2.msra.mxu0 0.0
    %730 = vmatprep.subr.mxu0 0.0
    %731 = vmatpush2.msra.mxu0 0.0
    %732 = vmatprep.subr.mxu0 0.0
    %733 = vmatpush2.msra.mxu0 0.0
    %734 = vmatprep.subr.mxu0 0.0
    %735 = vmatpush2.msra.mxu0 0.0
    %736 = vmatprep.subr.mxu0 0.0
    %737 = vmatpush2.msra.mxu0 0.0
    %738 = vmatprep.subr.mxu0 0.0
    %739 = vmatpush2.msra.mxu0 0.0
    %740 = vmatprep.subr.mxu0 0.0
    %741 = vmatpush2.msra.mxu0 0.0
    %742 = vmatprep.subr.mxu0 0.0
    %743 = vmatpush2.msra.mxu0 0.0
    %744 = vmatprep.subr.mxu0 0.0
    %745 = vmatpush2.msra.mxu0 0.0
    %746 = vmatprep.subr.mxu0 0.0
    %747 = vmatpush2.msra.mxu0 0.0
    %748 = vmatprep.mubr.f32.mxu0 0.0
    %749 = vmatmul.mubr.f32.gmra.mxu0 %v678
    %v750 = vpop.f32.mrf.mxu0
    %v751 = vadd.f32 %v634, %v750
    %v752 = vpop.f32.mrf.mxu0
    %753 = vmatprep.mubr.f32.mxu0 0.0
    %754 = vmatmul.mubr.f32.gmra.mxu0 %v680
    %v755 = vpop.f32.mrf.mxu0
    %v756 = vadd.f32 %v634, %v755
    %v757 = vpop.f32.mrf.mxu0
    %758 = vmatprep.mubr.f32.mxu0 0.0
    %759 = vmatmul.mubr.f32.gmra.mxu0 %v682
    %v760 = vpop.f32.mrf.mxu0
    %v761 = vadd.f32 %v634, %v760
    %v762 = vpop.f32.mrf.mxu0
    %763 = vdwg.mxu0
    %v764 = vmax.f32 %v751, 0.0
    %v765 = vmax.f32 %v756, 0.0
    %v766 = vmax.f32 %v761, 0.0
    %v770 = vcombine.high %v764, %v764
    %v772 = vunpack.c.l.s4 1983009808
    %v773 = vunpack.c.0.s8 %v772
    %v774 = vlaneseq
    %v775 = vshrl.u32 %v774, 7
    %v776 = vsub.s32 %v773, %v775
    %v777 = vrot.slane %v764, %v776
    %v779 = vunpack.c.l.s4 1983009808
    %v780 = vunpack.c.0.s8 %v779
    %v781 = vlaneseq
    %v782 = vshrl.u32 %v781, 7
    %v783 = vsub.s32 %v780, %v782
    %v784 = vrot.slane %v770, %v783
    %v785 = vcombine.high %v777, %v777
    %v786 = vcombine.high %v784, %v784
    %v787 = vcombine.high %v765, %v765
    %v789 = vunpack.c.l.s4 1983009808
    %v790 = vunpack.c.0.s8 %v789
    %v791 = vlaneseq
    %v792 = vshrl.u32 %v791, 7
    %v793 = vsub.s32 %v790, %v792
    %v794 = vrot.slane %v765, %v793
    %v796 = vunpack.c.l.s4 1983009808
    %v797 = vunpack.c.0.s8 %v796
    %v798 = vlaneseq
    %v799 = vshrl.u32 %v798, 7
    %v800 = vsub.s32 %v797, %v799
    %v801 = vrot.slane %v787, %v800
    %v802 = vcombine.high %v794, %v794
    %v803 = vcombine.high %v801, %v801
    %v805 = vunpack.c.l.s4 1983009808
    %v806 = vunpack.c.0.s8 %v805
    %v807 = vlaneseq
    %v808 = vshrl.u32 %v807, 7
    %v809 = vsub.s32 %v806, %v808
    %v810 = vrot.slane %v766, %v809
    %v811 = vcombine.high %v810, %v810
    %v812 = vcombine.low %v777, %v785
    %v813 = vcombine.low %v784, %v786
    %v815 = vunpack.c.l.s4 1983009808
    %v816 = vunpack.c.0.s8 %v815
    %v817 = vlaneseq
    %v818 = vshrl.u32 %v817, 7
    %v819 = vsub.s32 %v816, %v818
    %v820 = vrot.slane %v812, %v819
    %v822 = vunpack.c.l.s4 1983009808
    %v823 = vunpack.c.0.s8 %v822
    %v824 = vlaneseq
    %v825 = vshrl.u32 %v824, 7
    %v826 = vsub.s32 %v823, %v825
    %v827 = vrot.slane %v813, %v826
    %v828 = vcombine.low %v820, %v827
    %v830 = vunpack.c.l.s4 1983009808
    %v831 = vunpack.c.0.s8 %v830
    %v832 = vlaneseq
    %v833 = vshrl.u32 %v832, 7
    %v834 = vsub.s32 %v831, %v833
    %v835 = vrot.slane %v794, %v834
    %v836 = vcombine.low %v802, %v801
    %v837 = vcombine.low %v803, %v810
    %v839 = vunpack.c.l.s4 1983009808
    %v840 = vunpack.c.0.s8 %v839
    %v841 = vlaneseq
    %v842 = vshrl.u32 %v841, 7
    %v843 = vsub.s32 %v840, %v842
    %v844 = vrot.slane %v836, %v843
    %v846 = vunpack.c.l.s4 1983009808
    %v847 = vunpack.c.0.s8 %v846
    %v848 = vlaneseq
    %v849 = vshrl.u32 %v848, 7
    %v850 = vsub.s32 %v847, %v849
    %v851 = vrot.slane %v837, %v850
    %v852 = vcombine.low %v844, %v851
    %v854 = vunpack.c.l.s4 1983009808
    %v855 = vunpack.c.0.s8 %v854
    %v856 = vlaneseq
    %v857 = vshrl.u32 %v856, 7
    %v858 = vsub.s32 %v855, %v857
    %v859 = vrot.slane %v811, %v858
    %v864 = vsel %vm199, %v828, 0.0
    %vm865 = vcmask 254976
    %v866 = vsel %vm865, %v835, 0.0
    %v867 = vadd.f32 %v864, %v866
    %v868 = vrot.slane %v867, 4
    %v869 = vadd.f32 %v867, %v868
    %v870 = vrot.slane %v869, 2
    %v871 = vadd.f32 %v869, %v870
    %v872 = vrot.slane %v871, 1
    %v873 = vadd.f32 %v871, %v872
    %v874 = vsel %vm199, %v852, 0.0
    %v875 = vsel %vm865, %v859, 0.0
    %v876 = vadd.f32 %v874, %v875
    %v877 = vrot.slane %v876, 4
    %v878 = vadd.f32 %v876, %v877
    %v879 = vrot.slane %v878, 2
    %v880 = vadd.f32 %v878, %v879
    %v881 = vrot.slane %v880, 1
    %v882 = vadd.f32 %v880, %v881
    %v883 = vld [vmem:[%s7] sm:$0xff]
    %v884 = vld [vmem:[%s7 + $0x8] sm:$0xff]
    %v885 = vld [vmem:[%s7 + $0x10] sm:$0xff]
    %v886 = vld [vmem:[%s7 + $0x18] sm:$0xff]
    %v888 = vlaneseq
    %v889 = vshrl.u32 %v888, 7
    %v890 = vsub.s32 0, %v889
    %v891 = vrot.slane %v36, %v890
    %vm895 = vcmask 1041409
    %v896 = vsel %vm895, %v882, %v873
    %v897 = vsel %vm199, %v896, 0
    %899 = vmatprep.subr.mxu0 0.0
    %900 = vmatpush1.msra.mxu0 0.0
    %901 = vmatprep.subr.mxu0 0.0
    %902 = vmatpush1.msra.mxu0 0.0
    %903 = vmatprep.subr.mxu0 0.0
    %904 = vmatpush1.msra.mxu0 0.0
    %905 = vmatprep.subr.mxu0 0.0
    %906 = vmatpush1.msra.mxu0 0.0
    %907 = vmatprep.subr.mxu0 0.0
    %908 = vmatpush1.msra.mxu0 0.0
    %909 = vmatprep.subr.mxu0 0.0
    %910 = vmatpush1.msra.mxu0 0.0
    %911 = vmatprep.subr.mxu0 0.0
    %912 = vmatpush1.msra.mxu0 0.0
    %913 = vmatprep.subr.mxu0 0.0
    %914 = vmatpush1.msra.mxu0 0.0
    %915 = vmatprep.subr.mxu0 0.0
    %916 = vmatpush1.msra.mxu0 0.0
    %917 = vmatprep.subr.mxu0 0.0
    %918 = vmatpush1.msra.mxu0 0.0
    %919 = vmatprep.subr.mxu0 0.0
    %920 = vmatpush1.msra.mxu0 0.0
    %921 = vmatprep.subr.mxu0 0.0
    %922 = vmatpush1.msra.mxu0 0.0
    %923 = vmatprep.subr.mxu0 0.0
    %924 = vmatpush1.msra.mxu0 %v886
    %925 = vmatprep.subr.mxu0 0.0
    %926 = vmatpush1.msra.mxu0 %v885
    %927 = vmatprep.subr.mxu0 0.0
    %928 = vmatpush1.msra.mxu0 %v884
    %929 = vmatprep.subr.mxu0 0.0
    %930 = vmatpush1.msra.mxu0 %v883
    %931 = vmatprep.subr.mxu0 0.0
    %932 = vmatpush2.msra.mxu0 0.0
    %933 = vmatprep.subr.mxu0 0.0
    %934 = vmatpush2.msra.mxu0 0.0
    %935 = vmatprep.subr.mxu0 0.0
    %936 = vmatpush2.msra.mxu0 0.0
    %937 = vmatprep.subr.mxu0 0.0
    %938 = vmatpush2.msra.mxu0 0.0
    %939 = vmatprep.subr.mxu0 0.0
    %940 = vmatpush2.msra.mxu0 0.0
    %941 = vmatprep.subr.mxu0 0.0
    %942 = vmatpush2.msra.mxu0 0.0
    %943 = vmatprep.subr.mxu0 0.0
    %944 = vmatpush2.msra.mxu0 0.0
    %945 = vmatprep.subr.mxu0 0.0
    %946 = vmatpush2.msra.mxu0 0.0
    %947 = vmatprep.subr.mxu0 0.0
    %948 = vmatpush2.msra.mxu0 0.0
    %949 = vmatprep.subr.mxu0 0.0
    %950 = vmatpush2.msra.mxu0 0.0
    %951 = vmatprep.subr.mxu0 0.0
    %952 = vmatpush2.msra.mxu0 0.0
    %953 = vmatprep.subr.mxu0 0.0
    %954 = vmatpush2.msra.mxu0 0.0
    %955 = vmatprep.subr.mxu0 0.0
    %956 = vmatpush2.msra.mxu0 0.0
    %957 = vmatprep.subr.mxu0 0.0
    %958 = vmatpush2.msra.mxu0 0.0
    %959 = vmatprep.subr.mxu0 0.0
    %960 = vmatpush2.msra.mxu0 0.0
    %961 = vmatprep.subr.mxu0 0.0
    %962 = vmatpush2.msra.mxu0 0.0
    %963 = vmatprep.mubr.f32.mxu0 0.0
    %964 = vmatmul.mubr.f32.gmra.mxu0 %v897
    %v965 = vpop.f32.mrf.mxu0
    %v966 = vadd.f32 %v891, %v965
    %v967 = vpop.f32.mrf.mxu0
    %968 = vdwg.mxu0
    %969 = vst [vmem:[#allocation2] sm:$0x3] %v966
    // Predicated region
    $region38: #{tpu_custom_call.1} parent=1 // pred_check
      _
    $region39: #{tpu_custom_call.1} parent=1 // pred_check_branch
      %971 = sbr.rel (0) target = $region41
    $region40: #{tpu_custom_call.1} parent=1 // pred_region
      %s973 = ssub.s32 32, 32
      %974 = vsyncadd [#allocation3], %s973
      %s976 = sshll.u32 [#allocation2], 4
      %s977 = int_to_ptr.vmem [resolvable:$true] %s976
      %979 = dma.vmem_to_hbm [thread:$0]  %s977, 32, %s9, [#allocation3]
    $region41: #{tpu_custom_call.1} parent=1 // pred_fallthru
      _
    // Predicated region
    $region42: #{tpu_custom_call.1} parent=1 // pred_check
      _
    $region43: #{tpu_custom_call.1} parent=1 // pred_check_branch
      %981 = sbr.rel (0) target = $region45
    $region44: #{tpu_custom_call.1} parent=1 // pred_region
      %982 = dma.done [#allocation3], 32
    $region45: #{tpu_custom_call.1} parent=1 // pred_fallthru
      _
    %983 = vsyncpa [#allocation3], 1

</llo_original>
